<compile_context>
chip_gen: v6e
topology: v6e:2x2x1
jax: 0.10.0
libtpu: 0.0.40
codegen_flags: <defaults>
</compile_context>

<pallas_src>
import jax
import jax.numpy as jnp
from jax.experimental import pallas as pl
from jax.experimental.pallas import tpu as pltpu


# -----------------------------------------------------------------------------
# Kernel: apply a per-row (== per (batch, channel)) mask to a lane-dense slab.
#   x_ref: (TR, HW)   m_ref: (TR, 1)   o_ref: (TR, HW)
# Single slab op: the (TR,1)->(TR,HW) lane-broadcast is materialized once and the
# multiply is one wide VPU stream feeding unmasked vector stores.
# -----------------------------------------------------------------------------
def _apply_mask_kernel(x_ref, m_ref, o_ref):
    o_ref[...] = x_ref[...] * m_ref[...]


def _choose_row_tile(nc, hw, itemsize):
    """Pick a row tile (multiple of 8, divides nc) targeting ~4 MiB input blocks.

    Falls back to a single full-array block when the (8,128) tiling constraint
    cannot be met (odd shapes) — a full-extent block is always legal.
    """
    if nc <= 0 or hw <= 0 or hw % 128 != 0 or nc % 8 != 0:
        return nc
    target_bytes = 4 * 1024 * 1024
    rows = max(8, min(nc, target_bytes // max(1, hw * itemsize)))
    rows = (rows // 8) * 8
    while nc % rows != 0:
        rows -= 8
    return max(rows, 8)


def _dropout2d_apply(x_nchw, mask_1c11):
    """out = x * mask, mask shape (1, C, 1, 1), broadcast over (N, H, W)."""
    N, C, H, W = x_nchw.shape
    HW = H * W
    NC = N * C
    dtype = x_nchw.dtype
    itemsize = jnp.dtype(dtype).itemsize

    # Free views: lane-dense last dim, flattened (batch, channel) rows.
    x2 = x_nchw.reshape(NC, HW)
    # Per-row mask (row r <-> channel r % C). Tiny (N*C elements), built host-side.
    m_rows = jnp.tile(mask_1c11.reshape(1, C), (N, 1)).reshape(NC, 1).astype(dtype)

    tr = _choose_row_tile(NC, HW, itemsize)
    grid = (NC // tr,)

    cost = pl.CostEstimate(
        flops=NC * HW,
        transcendentals=0,
        bytes_accessed=(2 * NC * HW + NC) * itemsize,
    )

    out2 = pl.pallas_call(
        _apply_mask_kernel,
        grid=grid,
        in_specs=[
            pl.BlockSpec((tr, HW), lambda i: (i, 0)),
            pl.BlockSpec((tr, 1), lambda i: (i, 0)),
        ],
        out_specs=pl.BlockSpec((tr, HW), lambda i: (i, 0)),
        out_shape=jax.ShapeDtypeStruct((NC, HW), dtype),
        compiler_params=pltpu.CompilerParams(dimension_semantics=("parallel",)),
        cost_estimate=cost,
    )(x2, m_rows)
    return out2.reshape(N, C, H, W)


class PersistentDropout2d:
    """JAX/Pallas port of torch_points3d PersistentDropout2d (forward only).

    Mask persistence and the training/reset branching are host-side module state,
    exactly like the PyTorch module.
    """

    def __init__(self, input_nc, p=0.5):
        self.input_nc = input_nc
        self.p = float(p)
        self.mask = None          # persisted (1, C, 1, 1) mask, like torch's self.mask
        self.training = True

    def __call__(self, x, reset=False, key=None):
        if not self.training or not self.p:
            self.mask = None
            return x
        assert x.shape[1] == self.input_nc
        if self.mask is None or reset:
            if key is None:
                key = jax.random.PRNGKey(0)
            keep = jax.random.bernoulli(key, 1.0 - self.p, (1, self.input_nc, 1, 1))
            # mask math in f32, persisted in x's dtype (torch uses x.new_empty -> x dtype)
            self.mask = (keep.astype(jnp.float32) / jnp.float32(1.0 - self.p)).astype(x.dtype)
        return _dropout2d_apply(x, self.mask)


# -----------------------------------------------------------------------------
if __name__ == "__main__":
    N, C, H, W = 2, 16, 16, 16
    p = 0.5

    key = jax.random.PRNGKey(0)
    kx1, kx2, kmask = jax.random.split(key, 3)
    x = jax.random.normal(kx1, (N, C, H, W), jnp.float32)     # NCHW, PyTorch convention
    x2 = jax.random.normal(kx2, (N, C, H, W), jnp.float32)

    drop = PersistentDropout2d(input_nc=C, p=p)

    # 1) training, first call -> mask generated, persisted, applied by the Pallas kernel
    out1 = jax.block_until_ready(drop(x, reset=True, key=kmask))
    mask = drop.mask
    assert out1.shape == x.shape and out1.dtype == x.dtype
    assert mask.shape == (1, C, 1, 1)

    scale = 1.0 / (1.0 - p)
    mask_vals_ok = jnp.all((jnp.abs(mask) < 1e-6) | (jnp.abs(mask - scale) < 1e-5))
    assert bool(mask_vals_ok), "mask values must be 0 or 1/(1-p)"

    ref1 = x * jnp.broadcast_to(mask, x.shape)
    assert jnp.allclose(out1, ref1, rtol=1e-6, atol=1e-6), "mismatch (generate + apply)"

    # 2) training, second call without reset -> SAME persisted mask re-applied
    out2 = jax.block_until_ready(drop(x2, reset=False))
    ref2 = x2 * jnp.broadcast_to(mask, x2.shape)
    assert jnp.allclose(out2, ref2, rtol=1e-6, atol=1e-6), "mismatch (apply persisted mask)"
    assert jnp.array_equal(mask, drop.mask), "mask must persist when reset=False"

    # 3) dtype preservation: bf16 input stays bf16 through the kernel
    drop_bf16 = PersistentDropout2d(input_nc=C, p=p)
    x_bf16 = x.astype(jnp.bfloat16)
    out_bf16 = jax.block_until_ready(drop_bf16(x_bf16, reset=True, key=kmask))
    assert out_bf16.dtype == jnp.bfloat16
    ref_bf16 = x_bf16 * jnp.broadcast_to(drop_bf16.mask, x_bf16.shape)
    assert jnp.allclose(out_bf16.astype(jnp.float32), ref_bf16.astype(jnp.float32),
                        rtol=1e-2, atol=1e-2), "mismatch (bf16 path)"

    # 4) eval mode -> identity, mask cleared
    drop.training = False
    out3 = jax.block_until_ready(drop(x, reset=False))
    assert drop.mask is None
    assert jnp.allclose(out3, x), "eval mode must be identity"

    print("KERNEL_OK")
</pallas_src>

<mosaic_0001>
module attributes {stable_mosaic.version = 11 : i64} {
  func.func @_apply_mask_kernel(%arg0: i32, %arg1: memref<32x256xf32, #tpu.memory_space<vmem>>, %arg2: memref<32x1xf32, #tpu.memory_space<vmem>>, %arg3: memref<32x256xf32, #tpu.memory_space<vmem>>) attributes {dimension_semantics = [#tpu.dimension_semantics<parallel>], iteration_bounds = array<i64: 1>, scalar_prefetch = 0 : i64, scratch_operands = 0 : i64, tpu.core_type = #tpu.core_type<tc>, window_params = [{transform_indices = @transform_0, window_bounds = array<i64: 32, 256>}, {transform_indices = @transform_1, window_bounds = array<i64: 32, 1>}, {transform_indices = @transform_2, window_bounds = array<i64: 32, 256>}]} {
    %c0 = arith.constant 0 : index
    %c0_0 = arith.constant 0 : index
    %0 = vector.load %arg1[%c0, %c0_0] : memref<32x256xf32, #tpu.memory_space<vmem>>, vector<32x256xf32>
    %c0_1 = arith.constant 0 : index
    %c0_2 = arith.constant 0 : index
    %1 = vector.load %arg2[%c0_1, %c0_2] : memref<32x1xf32, #tpu.memory_space<vmem>>, vector<32x1xf32>
    %2 = vector.broadcast %1 : vector<32x1xf32> to vector<32x256xf32>
    %3 = arith.mulf %0, %2 : vector<32x256xf32>
    %c0_3 = arith.constant 0 : index
    %c0_4 = arith.constant 0 : index
    %4 = vector.load %arg3[%c0_3, %c0_4] : memref<32x256xf32, #tpu.memory_space<vmem>>, vector<32x256xf32>
    tpu.vector_store %arg3[%c0_3, %c0_4], %3 {strides = array<i32>} : memref<32x256xf32, #tpu.memory_space<vmem>>, vector<32x256xf32>,
    return
  }
  func.func @transform_0(%arg0: i32) -> (i32, i32) {
    %c0_i32 = arith.constant 0 : i32
    %c0_i32_0 = arith.constant 0 : i32
    return %arg0, %c0_i32 : i32, i32
  }
  func.func @transform_1(%arg0: i32) -> (i32, i32) {
    %c0_i32 = arith.constant 0 : i32
    %c0_i32_0 = arith.constant 0 : i32
    return %arg0, %c0_i32 : i32, i32
  }
  func.func @transform_2(%arg0: i32) -> (i32, i32) {
    %c0_i32 = arith.constant 0 : i32
    %c0_i32_0 = arith.constant 0 : i32
    return %arg0, %c0_i32 : i32, i32
  }
}

</mosaic_0001>

<llo_original>
// kernel: tpu_custom_call.1
$region0: #{tpu_custom_call.1}
  #allocation0 [shape = 'u32[]', space=smem, size = 0x4, offset = 0x4, fixed_abs, tag = 'smem constant byte address 0x4 - core index']
  #allocation1 [shape = 'u32[144,128]{1,0:T(1,128)}', space=vmem, size = 0x12000, scoped, tag = 'internal scratch']
  %s0 = inlined_call_operand.hbm [shape: f32[32,256], index: 0, kind: input, shape index: {}]
  %s1 = inlined_call_operand.vmem [shape: f32[32,1], index: 1, kind: input, shape index: {}]
  %s2 = inlined_call_operand.hbm [shape: f32[32,256], index: 2, kind: output, shape index: {}]
  %s3 = sld [smem:[#allocation0]]
  $region22: #{tpu_custom_call.1} parent=0
    _
  %s5 = ssub.s32 1, %s3
  %s6 = scalar_select 0, %s5, %s3
  $region1: #{tpu_custom_call.1} parent=0
    #allocation2 [shape = 'u8[32768]{0}', space=vmem, size = 0x8000, scoped, tag = 'input window, operand 0, single buffered']
    #allocation3 [shape = 's32[1]{0}', space=sflag, size = 0x4, scoped, tag = 'scoped memory for tpu_custom_call.1']
    #allocation4 [shape = 's32[1]{0}', space=sflag, size = 0x4, scoped, tag = 'scoped memory for tpu_custom_call.1']
    #allocation5 [shape = 'u8[32768]{0}', space=vmem, size = 0x8000, scoped, tag = 'output window, operand 0, single buffered']
    %7 = vsyncpa [#allocation3], 0
    %8 = vsyncpa [#allocation4], 0
    // Predicated region
    $region2: #{tpu_custom_call.1} parent=1 // pred_check
      _
    $region3: #{tpu_custom_call.1} parent=1 // pred_check_branch
      %10 = sbr.rel (0) target = $region5
    $region4: #{tpu_custom_call.1} parent=1 // pred_region
      %s12 = ssub.s32 1024, 1024
      %13 = vsyncadd [#allocation3], %s12
      %s14 = sshll.u32 [#allocation2], 4
      %s15 = int_to_ptr.vmem [resolvable:$true] %s14
      %20 = dma.hbm_to_vmem [thread:$0]  %s0, 1024, %s15, [#allocation3], 256, 256, 16
    $region5: #{tpu_custom_call.1} parent=1 // pred_fallthru
      _
    // Predicated region
    $region6: #{tpu_custom_call.1} parent=1 // pred_check
      _
    $region7: #{tpu_custom_call.1} parent=1 // pred_check_branch
      %22 = sbr.rel (0) target = $region9
    $region8: #{tpu_custom_call.1} parent=1 // pred_region
      _
    $region9: #{tpu_custom_call.1} parent=1 // pred_fallthru
      _
    // Predicated region
    $region10: #{tpu_custom_call.1} parent=1 // pred_check
      _
    $region11: #{tpu_custom_call.1} parent=1 // pred_check_branch
      %24 = sbr.rel (0) target = $region13
    $region12: #{tpu_custom_call.1} parent=1 // pred_region
      %25 = dma.done [#allocation3], 1024
    $region13: #{tpu_custom_call.1} parent=1 // pred_fallthru
      _
    %v26 = vld [vmem:[#allocation2] sm:$0xff]
    %v27 = vld [vmem:[#allocation2 + $0x8] sm:$0xff]
    %v28 = vld [vmem:[#allocation2 + $0x10] sm:$0xff]
    %v29 = vld [vmem:[#allocation2 + $0x18] sm:$0xff]
    %v30 = vld [vmem:[#allocation2 + $0x20] sm:$0xff]
    %v31 = vld [vmem:[#allocation2 + $0x28] sm:$0xff]
    %v32 = vld [vmem:[#allocation2 + $0x30] sm:$0xff]
    %v33 = vld [vmem:[#allocation2 + $0x38] sm:$0xff]
    %v34 = vld [vmem:[%s1] sm:$0xff]
    %v35 = vld [vmem:[%s1 + $0x8] sm:$0xff]
    %v36 = vld [vmem:[%s1 + $0x10] sm:$0xff]
    %v37 = vld [vmem:[%s1 + $0x18] sm:$0xff]
    %39 = vset.pattern.permute.xlu0 0
    %40 = vperm.xlu0 %39, %v34
    %v41 = vpop.permute.xlu0 %40
    %44 = vset.pattern.permute.xlu0 0
    %45 = vperm.xlu0 %44, %v35
    %v46 = vpop.permute.xlu0 %45
    %49 = vset.pattern.permute.xlu0 0
    %50 = vperm.xlu0 %49, %v36
    %v51 = vpop.permute.xlu0 %50
    %54 = vset.pattern.permute.xlu0 0
    %55 = vperm.xlu0 %54, %v37
    %v56 = vpop.permute.xlu0 %55
    %v58 = vmul.f32 %v26, %v41
    %v59 = vmul.f32 %v27, %v41
    %v60 = vmul.f32 %v28, %v46
    %v61 = vmul.f32 %v29, %v46
    %v62 = vmul.f32 %v30, %v51
    %v63 = vmul.f32 %v31, %v51
    %v64 = vmul.f32 %v32, %v56
    %v65 = vmul.f32 %v33, %v56
    %66 = vst [vmem:[#allocation5] sm:$0xff] %v58
    %67 = vst [vmem:[#allocation5 + $0x8] sm:$0xff] %v59
    %68 = vst [vmem:[#allocation5 + $0x10] sm:$0xff] %v60
    %69 = vst [vmem:[#allocation5 + $0x18] sm:$0xff] %v61
    %70 = vst [vmem:[#allocation5 + $0x20] sm:$0xff] %v62
    %71 = vst [vmem:[#allocation5 + $0x28] sm:$0xff] %v63
    %72 = vst [vmem:[#allocation5 + $0x30] sm:$0xff] %v64
    %73 = vst [vmem:[#allocation5 + $0x38] sm:$0xff] %v65
    // Predicated region
    $region14: #{tpu_custom_call.1} parent=1 // pred_check
      _
    $region15: #{tpu_custom_call.1} parent=1 // pred_check_branch
      %75 = sbr.rel (0) target = $region17
    $region16: #{tpu_custom_call.1} parent=1 // pred_region
      %s77 = ssub.s32 1024, 1024
      %78 = vsyncadd [#allocation4], %s77
      %s79 = sshll.u32 [#allocation5], 4
      %s80 = int_to_ptr.vmem [resolvable:$true] %s79
      %85 = dma.vmem_to_hbm [thread:$0]  %s80, 1024, %s2, [#allocation4], 256, 256, 16
    $region17: #{tpu_custom_call.1} parent=1 // pred_fallthru
      _
    // Predicated region
    $region18: #{tpu_custom_call.1} parent=1 // pred_check
      _
    $region19: #{tpu_custom_call.1} parent=1 // pred_check_branch
      %87 = sbr.rel (0) target = $region21
    $region20: #{tpu_custom_call.1} parent=1 // pred_region
      %88 = dma.done [#allocation4], 1024
    $region21: #{tpu_custom_call.1} parent=1 // pred_fallthru
      _
    %89 = vsyncpa [#allocation3], 1
    %90 = vsyncpa [#allocation4], 1

</llo_original>
